<compile_context>
chip_gen: v6e
topology: v6e:2x2x1
jax: 0.10.0
libtpu: 0.0.40
codegen_flags: <defaults>
</compile_context>

<pallas_src>
import jax
import jax.numpy as jnp
from jax.experimental import pallas as pl
from jax.experimental.pallas import tpu as pltpu


def _encoder_kernel(x_ref, w_ref, b_ref, o_ref):
    # x_ref: (1, C_in, T)   w_ref: (C_out, C_in)   b_ref: (C_out, 1)
    # o_ref: (1, C_out, T)
    x = x_ref[0].astype(jnp.float32)        # (C_in, T)   channels on sublanes
    w = w_ref[...].astype(jnp.float32)      # (C_out, C_in)
    b = b_ref[...].astype(jnp.float32)      # (C_out, 1)
    c_out, c_in = w.shape
    t = x.shape[-1]

    acc = jnpp = jnp.broadcast_to(b, (c_out, t))
    # K = C_in (=3) static VPU FMAs: out[o, :] += w[o, k] * x[k, :]
    for k in range(c_in):
        acc = acc + w[:, k:k + 1] * x[k:k + 1, :]

    o_ref[0] = acc.astype(o_ref.dtype)


def simple_encoder_pallas(x_nchw, weight, bias, *, max_tile=2048, out_dtype=None):
    """x_nchw: (N, C_in, H, W); weight: (C_out, C_in); bias: (C_out,)."""
    n, c_in, h, w = x_nchw.shape
    c_out, c_in_w = weight.shape
    assert c_in_w == c_in, "weight shape must be (C_out, C_in)"
    out_dtype = out_dtype if out_dtype is not None else x_nchw.dtype
    hw = h * w

    # NCHW -> (N, C_in, H*W): merging trailing dims is a free reshape.
    x3 = x_nchw.reshape(n, c_in, hw)

    # Lane-axis (H*W) tile selection: full extent if small, else 2048-wide tiles
    # with pad+slice for the partial last tile (no divisibility requirement).
    if hw <= max_tile:
        t_hw, hw_pad = hw, hw
    else:
        t_hw = max_tile
        hw_pad = pl.cdiv(hw, t_hw) * t_hw
        if hw_pad != hw:
            x3 = jnp.pad(x3, ((0, 0), (0, 0), (0, hw_pad - hw)))

    b2d = bias.reshape(c_out, 1)

    itemsize_in = jnp.dtype(x3.dtype).itemsize
    itemsize_out = jnp.dtype(out_dtype).itemsize
    cost = pl.CostEstimate(
        flops=2 * n * hw_pad * c_in * c_out,
        transcendentals=0,
        bytes_accessed=(n * c_in * hw_pad * itemsize_in
                        + weight.size * jnp.dtype(weight.dtype).itemsize
                        + bias.size * jnp.dtype(bias.dtype).itemsize
                        + n * c_out * hw_pad * itemsize_out),
    )

    out3 = pl.pallas_call(
        _encoder_kernel,
        out_shape=jax.ShapeDtypeStruct((n, c_out, hw_pad), out_dtype),
        grid_spec=pltpu.PrefetchScalarGridSpec(
            num_scalar_prefetch=0,
            grid=(n, hw_pad // t_hw),
            in_specs=[
                pl.BlockSpec((1, c_in, t_hw), lambda b, i: (b, 0, i)),   # x tile
                pl.BlockSpec((c_out, c_in), lambda b, i: (0, 0)),        # weight (resident)
                pl.BlockSpec((c_out, 1), lambda b, i: (0, 0)),           # bias   (resident)
            ],
            out_specs=pl.BlockSpec((1, c_out, t_hw), lambda b, i: (b, 0, i)),
        ),
        compiler_params=pltpu.CompilerParams(
            dimension_semantics=("parallel", "parallel")),
        cost_estimate=cost,
    )(x3, weight, b2d)

    if hw_pad != hw:
        out3 = out3[:, :, :hw]
    # (N, C_out, H*W) -> NCHW: free reshape, no transpose.
    return out3.reshape(n, c_out, h, w)


def simple_encoder_ref(x_nchw, weight, bias):
    # Pure-JAX reference: 1x1 channel projection in NCHW.
    return jnp.einsum("nchw,oc->nohw", x_nchw, weight) + bias[None, :, None, None]


if __name__ == "__main__":
    input_dim, output_dim = 3, 128
    N, H, W = 2, 16, 16

    key = jax.random.PRNGKey(0)
    kx, kw, kb = jax.random.split(key, 3)

    x = jax.random.normal(kx, (N, input_dim, H, W), dtype=jnp.float32)
    # Deterministic "kaiming-like" init for the synthesized encoder params.
    weight = jax.random.normal(kw, (output_dim, input_dim), dtype=jnp.float32) * (
        1.0 / jnp.sqrt(input_dim)
    )
    bias = jax.random.normal(kb, (output_dim,), dtype=jnp.float32) * 0.01

    out = simple_encoder_pallas(x, weight, bias)
    out = jax.block_until_ready(out)

    ref = simple_encoder_ref(x, weight, bias)
    assert out.shape == (N, output_dim, H, W), out.shape
    assert jnp.allclose(out, ref, atol=1e-5, rtol=1e-5), "mismatch vs JAX reference"

    print("KERNEL_OK")
</pallas_src>

<mosaic_0001>
module attributes {stable_mosaic.version = 11 : i64} {
  func.func @_encoder_kernel(%arg0: i32, %arg1: i32, %arg2: memref<1x3x256xf32, #tpu.memory_space<vmem>>, %arg3: memref<128x3xf32, #tpu.memory_space<vmem>>, %arg4: memref<128x1xf32, #tpu.memory_space<vmem>>, %arg5: memref<1x128x256xf32, #tpu.memory_space<vmem>>) attributes {dimension_semantics = [#tpu.dimension_semantics<parallel>, #tpu.dimension_semantics<parallel>], iteration_bounds = array<i64: 2, 1>, scalar_prefetch = 0 : i64, scratch_operands = 0 : i64, tpu.core_type = #tpu.core_type<tc>, window_params = [{transform_indices = @transform_0, window_bounds = array<i64: 1, 3, 256>}, {pipeline_mode = #tpu.pipeline_mode<synchronous>, transform_indices = @transform_1, window_bounds = array<i64: 128, 3>}, {pipeline_mode = #tpu.pipeline_mode<synchronous>, transform_indices = @transform_2, window_bounds = array<i64: 128, 1>}, {transform_indices = @transform_3, window_bounds = array<i64: 1, 128, 256>}]} {
    %c0 = arith.constant 0 : index
    %c0_0 = arith.constant 0 : index
    %c0_1 = arith.constant 0 : index
    %0 = vector.load %arg2[%c0, %c0_0, %c0_1] : memref<1x3x256xf32, #tpu.memory_space<vmem>>, vector<1x3x256xf32>
    %1 = vector.shape_cast %0 : vector<1x3x256xf32> to vector<3x256xf32>
    %c0_2 = arith.constant 0 : index
    %c0_3 = arith.constant 0 : index
    %2 = vector.load %arg3[%c0_2, %c0_3] : memref<128x3xf32, #tpu.memory_space<vmem>>, vector<128x3xf32>
    %c0_4 = arith.constant 0 : index
    %c0_5 = arith.constant 0 : index
    %3 = vector.load %arg4[%c0_4, %c0_5] : memref<128x1xf32, #tpu.memory_space<vmem>>, vector<128x1xf32>
    %4 = vector.shape_cast %3 : vector<128x1xf32> to vector<128x1xf32>
    %5 = vector.broadcast %4 : vector<128x1xf32> to vector<128x256xf32>
    %6 = vector.extract_strided_slice %2 {offsets = [0, 0], sizes = [128, 1], strides = [1, 1]} : vector<128x3xf32> to vector<128x1xf32>
    %7 = vector.extract_strided_slice %1 {offsets = [0, 0], sizes = [1, 256], strides = [1, 1]} : vector<3x256xf32> to vector<1x256xf32>
    %8 = vector.broadcast %6 : vector<128x1xf32> to vector<128x256xf32>
    %9 = vector.broadcast %7 : vector<1x256xf32> to vector<128x256xf32>
    %10 = arith.mulf %8, %9 : vector<128x256xf32>
    %11 = arith.addf %5, %10 : vector<128x256xf32>
    %12 = vector.extract_strided_slice %2 {offsets = [0, 1], sizes = [128, 1], strides = [1, 1]} : vector<128x3xf32> to vector<128x1xf32>
    %13 = vector.extract_strided_slice %1 {offsets = [1, 0], sizes = [1, 256], strides = [1, 1]} : vector<3x256xf32> to vector<1x256xf32>
    %14 = vector.broadcast %12 : vector<128x1xf32> to vector<128x256xf32>
    %15 = vector.broadcast %13 : vector<1x256xf32> to vector<128x256xf32>
    %16 = arith.mulf %14, %15 : vector<128x256xf32>
    %17 = arith.addf %11, %16 : vector<128x256xf32>
    %18 = vector.extract_strided_slice %2 {offsets = [0, 2], sizes = [128, 1], strides = [1, 1]} : vector<128x3xf32> to vector<128x1xf32>
    %19 = vector.extract_strided_slice %1 {offsets = [2, 0], sizes = [1, 256], strides = [1, 1]} : vector<3x256xf32> to vector<1x256xf32>
    %20 = vector.broadcast %18 : vector<128x1xf32> to vector<128x256xf32>
    %21 = vector.broadcast %19 : vector<1x256xf32> to vector<128x256xf32>
    %22 = arith.mulf %20, %21 : vector<128x256xf32>
    %23 = arith.addf %17, %22 : vector<128x256xf32>
    %c0_6 = arith.constant 0 : index
    %c0_7 = arith.constant 0 : index
    %c0_8 = arith.constant 0 : index
    %24 = vector.load %arg5[%c0_6, %c0_7, %c0_8] : memref<1x128x256xf32, #tpu.memory_space<vmem>>, vector<1x128x256xf32>
    %25 = vector.shape_cast %24 : vector<1x128x256xf32> to vector<128x256xf32>
    %26 = vector.shape_cast %23 : vector<128x256xf32> to vector<1x128x256xf32>
    tpu.vector_store %arg5[%c0_6, %c0_7, %c0_8], %26 {strides = array<i32>} : memref<1x128x256xf32, #tpu.memory_space<vmem>>, vector<1x128x256xf32>,
    return
  }
  func.func @transform_0(%arg0: i32, %arg1: i32) -> (i32, i32, i32) {
    %c0_i32 = arith.constant 0 : i32
    %c0_i32_0 = arith.constant 0 : i32
    return %arg0, %c0_i32, %arg1 : i32, i32, i32
  }
  func.func @transform_1(%arg0: i32, %arg1: i32) -> (i32, i32) {
    %c0_i32 = arith.constant 0 : i32
    %c0_i32_0 = arith.constant 0 : i32
    %c0_i32_1 = arith.constant 0 : i32
    return %c0_i32, %c0_i32_0 : i32, i32
  }
  func.func @transform_2(%arg0: i32, %arg1: i32) -> (i32, i32) {
    %c0_i32 = arith.constant 0 : i32
    %c0_i32_0 = arith.constant 0 : i32
    %c0_i32_1 = arith.constant 0 : i32
    return %c0_i32, %c0_i32_0 : i32, i32
  }
  func.func @transform_3(%arg0: i32, %arg1: i32) -> (i32, i32, i32) {
    %c0_i32 = arith.constant 0 : i32
    %c0_i32_0 = arith.constant 0 : i32
    return %arg0, %c0_i32, %arg1 : i32, i32, i32
  }
}

</mosaic_0001>

<llo_original>
// kernel: tpu_custom_call.1
$region0: #{tpu_custom_call.1}
  #allocation0 [shape = 'u32[]', space=smem, size = 0x4, offset = 0x4, fixed_abs, tag = 'smem constant byte address 0x4 - core index']
  #allocation1 [shape = 'u32[144,128]{1,0:T(1,128)}', space=vmem, size = 0x12000, scoped, tag = 'internal scratch']
  %s0 = inlined_call_operand.vmem [shape: f32[2,3,256], index: 0, kind: input, shape index: {}]
  %s1 = inlined_call_operand.vmem [shape: f32[128,3], index: 1, kind: input, shape index: {}]
  %s2 = inlined_call_operand.vmem [shape: f32[128,1], index: 2, kind: input, shape index: {}]
  %s3 = inlined_call_operand.hbm [shape: f32[2,128,256], index: 3, kind: output, shape index: {}]
  %s4 = sld [smem:[#allocation0]]
  $region45: #{tpu_custom_call.1} parent=0
    _
  %s6 = ssub.s32 1, %s4
  %s7 = scalar_select 0, %s6, %s4
  $region1: #{tpu_custom_call.1} parent=0
    #allocation2 [shape = 'u8[262144]{0}', space=vmem, size = 0x40000, scoped, tag = 'output window, operand 0']
    #allocation3 [shape = 's32[2]{0}', space=sflag, size = 0x8, scoped, tag = 'scoped memory for tpu_custom_call.1']
    %8 = vsyncpa [#allocation3], 0
    %s9 = scalar_lea.sflag [#allocation3], 1
    %10 = vsyncpa %s9, 0
    loop: start=0, step=1, limit=4
    $region2: #{tpu_custom_call.1} parent=1 // loop_pre_header
      _
    $region3: #{tpu_custom_call.1} parent=1 // loop_header
      %s12 = sphi 0, %s16
      %p13 = scmp.ge.s32.totalorder %s12, 4
      %s19 = sphi 0, %s31
      %s20 = sphi 0, %s27
      %s21 = sphi 0, %s19
      %s22 = sphi 0, %s20
      %s23 = sphi 0, %s21
      %s24 = sphi 0, %s22
      %s36 = sphi 0, %s38
      %s39 = sphi 0, %s36
      %s40 = sphi 0, %s39
      %s56 = sphi 0, %s40
      %s60 = sphi 0, %s60
      %s62 = sphi 0, %s60
      %s63 = sphi 0, %s62
      %s77 = sphi 0, %s63
      %s81 = sphi 0, %s81
      %s83 = sphi 0, %s81
      %s84 = sphi 0, %s83
      %s98 = sphi 0, %s84
      %s106 = sphi 0, %s108
      %s109 = sphi 0, %s106
      %s110 = sphi 0, %s109
      %s126 = sphi 0, %s110
    $region4: #{tpu_custom_call.1} parent=1 // loop_header_branch
      %15 = sbr.rel (%p13) target = $region8
    $region5: #{tpu_custom_call.1} parent=1 // loop_body
      %s17 = ssub.s32 %s12, 1
      %s18 = ssub.s32 %s12, 2
      %s25 = sadd.s32 1, %s20
      %p26 = scmp.ge.s32.totalorder %s25, 1
      %s27 = scalar_select %p26, 0, %s25
      %s28 = sadd.s32 1, %s19
      %s29 = scalar_select %p26, %s28, %s19
      %p30 = scmp.ge.s32.totalorder %s29, 2
      %s31 = scalar_select %p30, 0, %s29
      %s32 = ssub.s32 %s19, %s31
      %s33 = ssub.s32 %s20, %s27
      %s34 = sor.u32 %s32, %s33
      %p35 = scmp.eq.s32.totalorder %s34, 0
      %s37 = sadd.s32 %s36, 1
      %s38 = scalar_select %p35, %s36, %s37
      %p41 = pneg %p35
      %p42 = scmp.eq.s32.totalorder %s12, 1
      %p43 = por %p41, %p42
      %p44 = scmp.ne.s32.totalorder %s36, %s39
      %p45 = scmp.eq.s32.totalorder %s12, 0
      %p46 = por %p44, %p45
      %p47 = scmp.ne.s32.totalorder %s36, %s39
      %p48 = scmp.eq.s32.totalorder %s17, 1
      %p49 = por %p47, %p48
      %p50 = scmp.ne.s32.totalorder %s39, %s40
      %p51 = scmp.eq.s32.totalorder %s17, 0
      %p52 = por %p50, %p51
      %p53 = scmp.ne.s32.totalorder %s39, %s40
      %p54 = scmp.eq.s32.totalorder %s18, 1
      %p55 = por %p53, %p54
      %p57 = scmp.ne.s32.totalorder %s40, %s56
      %p58 = scmp.eq.s32.totalorder %s18, 0
      %p59 = por %p57, %p58
      %s61 = sadd.s32 %s60, 1
      %p64 = scmp.eq.s32.totalorder %s12, 1
      %p65 = scmp.ne.s32.totalorder %s60, %s62
      %p66 = scmp.eq.s32.totalorder %s12, 0
      %p67 = por %p65, %p66
      %p68 = scmp.ne.s32.totalorder %s60, %s62
      %p69 = scmp.eq.s32.totalorder %s17, 1
      %p70 = por %p68, %p69
      %p71 = scmp.ne.s32.totalorder %s62, %s63
      %p72 = scmp.eq.s32.totalorder %s17, 0
      %p73 = por %p71, %p72
      %p74 = scmp.ne.s32.totalorder %s62, %s63
      %p75 = scmp.eq.s32.totalorder %s18, 1
      %p76 = por %p74, %p75
      %p78 = scmp.ne.s32.totalorder %s63, %s77
      %p79 = scmp.eq.s32.totalorder %s18, 0
      %p80 = por %p78, %p79
      %s82 = sadd.s32 %s81, 1
      %p85 = scmp.eq.s32.totalorder %s12, 1
      %p86 = scmp.ne.s32.totalorder %s81, %s83
      %p87 = scmp.eq.s32.totalorder %s12, 0
      %p88 = por %p86, %p87
      %p89 = scmp.ne.s32.totalorder %s81, %s83
      %p90 = scmp.eq.s32.totalorder %s17, 1
      %p91 = por %p89, %p90
      %p92 = scmp.ne.s32.totalorder %s83, %s84
      %p93 = scmp.eq.s32.totalorder %s17, 0
      %p94 = por %p92, %p93
      %p95 = scmp.ne.s32.totalorder %s83, %s84
      %p96 = scmp.eq.s32.totalorder %s18, 1
      %p97 = por %p95, %p96
      %p99 = scmp.ne.s32.totalorder %s84, %s98
      %p100 = scmp.eq.s32.totalorder %s18, 0
      %p101 = por %p99, %p100
      %s102 = ssub.s32 %s19, %s31
      %s103 = ssub.s32 %s20, %s27
      %s104 = sor.u32 %s102, %s103
      %p105 = scmp.eq.s32.totalorder %s104, 0
      %s107 = sadd.s32 %s106, 1
      %s108 = scalar_select %p105, %s106, %s107
      %p111 = pneg %p105
      %p112 = scmp.eq.s32.totalorder %s12, 1
      %p113 = por %p111, %p112
      %p114 = scmp.ne.s32.totalorder %s106, %s109
      %p115 = scmp.eq.s32.totalorder %s12, 0
      %p116 = por %p114, %p115
      %p117 = scmp.ne.s32.totalorder %s106, %s109
      %p118 = scmp.eq.s32.totalorder %s17, 1
      %p119 = por %p117, %p118
      %p120 = scmp.ne.s32.totalorder %s109, %s110
      %p121 = scmp.eq.s32.totalorder %s17, 0
      %p122 = por %p120, %p121
      %p123 = scmp.ne.s32.totalorder %s109, %s110
      %p124 = scmp.eq.s32.totalorder %s18, 1
      %p125 = por %p123, %p124
      %p127 = scmp.ne.s32.totalorder %s110, %s126
      %p128 = scmp.eq.s32.totalorder %s18, 0
      %p129 = por %p127, %p128
      %p130 = scmp.le.s32.totalorder 1, %s12
      %p131 = scmp.lt.s32.totalorder %s12, 3
      %p132 = pnand %p130, %p131
      %p133 = pneg %p132
      // Predicated region
      $region9: #{tpu_custom_call.1} parent=5 // pred_check
        _
      $region10: #{tpu_custom_call.1} parent=5 // pred_check_branch
        %135 = sbr.rel (%p132) target = $region12
      $region11: #{tpu_custom_call.1} parent=5 // pred_region
        %s136 = ssub.s32 %s12, 1
        // Predicated region
        $region13: #{tpu_custom_call.1} parent=11 // pred_check
          %p137 = pneg %p73
        $region14: #{tpu_custom_call.1} parent=11 // pred_check_branch
          %139 = sbr.rel (%p137) target = $region16
        $region15: #{tpu_custom_call.1} parent=11 // pred_region
          _
        $region16: #{tpu_custom_call.1} parent=11 // pred_fallthru
          _
        // Predicated region
        $region17: #{tpu_custom_call.1} parent=11 // pred_check
          %p140 = pneg %p94
        $region18: #{tpu_custom_call.1} parent=11 // pred_check_branch
          %142 = sbr.rel (%p140) target = $region20
        $region19: #{tpu_custom_call.1} parent=11 // pred_region
          _
        $region20: #{tpu_custom_call.1} parent=11 // pred_fallthru
          _
      $region12: #{tpu_custom_call.1} parent=5 // pred_fallthru
        _
      %p143 = scmp.lt.s32.totalorder %s12, 2
      // Predicated region
      $region21: #{tpu_custom_call.1} parent=5 // pred_check
        %p144 = pneg %p143
      $region22: #{tpu_custom_call.1} parent=5 // pred_check_branch
        %146 = sbr.rel (%p144) target = $region24
      $region23: #{tpu_custom_call.1} parent=5 // pred_region
        // Predicated region
        $region25: #{tpu_custom_call.1} parent=23 // pred_check
          %p147 = pneg %p46
        $region26: #{tpu_custom_call.1} parent=23 // pred_check_branch
          %149 = sbr.rel (%p147) target = $region28
        $region27: #{tpu_custom_call.1} parent=23 // pred_region
          %s150 = smul.u32 2, %s20
          %p151 = scmp.lt.s32.totalorder %s19, 1
          %s152 = scalar_select %p151, %s19, 1
          %p153 = scmp.lt.s32.totalorder %s150, 1
          %s154 = scalar_select %p153, %s150, 1
          %s155 = smul.addr %s152, 2
          %s156 = sadd.s32 %s154, %s155
          %s157 = smul.addr %s156, 4
          %s158 = scalar_lea.vmem %s0, %s157
          %s159 = smul.u32 2, %s20
        $region28: #{tpu_custom_call.1} parent=23 // pred_fallthru
          _
      $region24: #{tpu_custom_call.1} parent=5 // pred_fallthru
        _
      %p160 = scmp.le.s32.totalorder 1, %s12
      %p161 = scmp.lt.s32.totalorder %s12, 3
      %p162 = pnand %p160, %p161
      %p163 = pneg %p162
      // Predicated region
      $region29: #{tpu_custom_call.1} parent=5 // pred_check
        _
      $region30: #{tpu_custom_call.1} parent=5 // pred_check_branch
        %165 = sbr.rel (%p162) target = $region32
      $region31: #{tpu_custom_call.1} parent=5 // pred_region
        %s166 = ssub.s32 %s12, 1
        %s167 = smul.u32 2, %s22
        %p168 = scmp.lt.s32.totalorder %s21, 1
        %s169 = scalar_select %p168, %s21, 1
        %p170 = scmp.lt.s32.totalorder %s167, 1
        %s171 = scalar_select %p170, %s167, 1
        %s172 = smul.addr %s169, 2
        %s173 = sadd.s32 %s171, %s172
        %s174 = smul.addr %s173, 4
        %s175 = scalar_lea.vmem %s0, %s174
        %p176 = pneg %p52
        %p177 = pneg %p49
        %p178 = pneg %p73
        %p179 = pneg %p70
        %p180 = pneg %p94
        %p181 = pneg %p91
        %p182 = pneg %p122
        %p183 = pneg %p119
        %s184 = sand.u32 %s109, 1
        %s185 = scalar_lea.sflag [#allocation3], %s184
        %s186 = sand.u32 %s109, 1
        %s187 = smul.addr %s186, 256
        %s188 = scalar_lea.vmem [#allocation2], %s187
        %s189 = smul.u32 2, %s22
        %p190 = scmp.lt.s32.totalorder %s21, 1
        %s191 = scalar_select %p190, %s21, 1
        %p192 = scmp.lt.s32.totalorder %s189, 1
        %s193 = scalar_select %p192, %s189, 1
        %s194 = smul.addr %s191, 2
        %s195 = sadd.s32 %s193, %s194
        %s196 = smul.addr %s195, 4
        %s197 = scalar_lea.vmem %s0, %s196
        %s198 = smul.u32 2, %s22
        %s199 = smul.u32 2, %s22
        %v200 = vld [vmem:[%s197] sm:$0x77]
        %v201 = vld [vmem:[%s1] sm:$0xff]
        %v202 = vld [vmem:[%s1 + $0x8] sm:$0xff]
        %v203 = vld [vmem:[%s1 + $0x10] sm:$0xff]
        %v204 = vld [vmem:[%s1 + $0x18] sm:$0xff]
        %v205 = vld [vmem:[%s1 + $0x20] sm:$0xff]
        %v206 = vld [vmem:[%s1 + $0x28] sm:$0xff]
        %v207 = vld [vmem:[%s1 + $0x30] sm:$0xff]
        %v208 = vld [vmem:[%s1 + $0x38] sm:$0xff]
        %v209 = vld [vmem:[%s1 + $0x40] sm:$0xff]
        %v210 = vld [vmem:[%s1 + $0x48] sm:$0xff]
        %v211 = vld [vmem:[%s1 + $0x50] sm:$0xff]
        %v212 = vld [vmem:[%s1 + $0x58] sm:$0xff]
        %v213 = vld [vmem:[%s1 + $0x60] sm:$0xff]
        %v214 = vld [vmem:[%s1 + $0x68] sm:$0xff]
        %v215 = vld [vmem:[%s1 + $0x70] sm:$0xff]
        %v216 = vld [vmem:[%s1 + $0x78] sm:$0xff]
        %v217 = vld [vmem:[%s2] sm:$0xff]
        %v218 = vld [vmem:[%s2 + $0x8] sm:$0xff]
        %v219 = vld [vmem:[%s2 + $0x10] sm:$0xff]
        %v220 = vld [vmem:[%s2 + $0x18] sm:$0xff]
        %v221 = vld [vmem:[%s2 + $0x20] sm:$0xff]
        %v222 = vld [vmem:[%s2 + $0x28] sm:$0xff]
        %v223 = vld [vmem:[%s2 + $0x30] sm:$0xff]
        %v224 = vld [vmem:[%s2 + $0x38] sm:$0xff]
        %v225 = vld [vmem:[%s2 + $0x40] sm:$0xff]
        %v226 = vld [vmem:[%s2 + $0x48] sm:$0xff]
        %v227 = vld [vmem:[%s2 + $0x50] sm:$0xff]
        %v228 = vld [vmem:[%s2 + $0x58] sm:$0xff]
        %v229 = vld [vmem:[%s2 + $0x60] sm:$0xff]
        %v230 = vld [vmem:[%s2 + $0x68] sm:$0xff]
        %v231 = vld [vmem:[%s2 + $0x70] sm:$0xff]
        %v232 = vld [vmem:[%s2 + $0x78] sm:$0xff]
        %234 = vset.pattern.permute.xlu0 0
        %235 = vperm.xlu0 %234, %v217
        %v236 = vpop.permute.xlu0 %235
        %239 = vset.pattern.permute.xlu0 0
        %240 = vperm.xlu0 %239, %v218
        %v241 = vpop.permute.xlu0 %240
        %244 = vset.pattern.permute.xlu0 0
        %245 = vperm.xlu0 %244, %v219
        %v246 = vpop.permute.xlu0 %245
        %249 = vset.pattern.permute.xlu0 0
        %250 = vperm.xlu0 %249, %v220
        %v251 = vpop.permute.xlu0 %250
        %254 = vset.pattern.permute.xlu0 0
        %255 = vperm.xlu0 %254, %v221
        %v256 = vpop.permute.xlu0 %255
        %259 = vset.pattern.permute.xlu0 0
        %260 = vperm.xlu0 %259, %v222
        %v261 = vpop.permute.xlu0 %260
        %264 = vset.pattern.permute.xlu0 0
        %265 = vperm.xlu0 %264, %v223
        %v266 = vpop.permute.xlu0 %265
        %269 = vset.pattern.permute.xlu0 0
        %270 = vperm.xlu0 %269, %v224
        %v271 = vpop.permute.xlu0 %270
        %274 = vset.pattern.permute.xlu0 0
        %275 = vperm.xlu0 %274, %v225
        %v276 = vpop.permute.xlu0 %275
        %279 = vset.pattern.permute.xlu0 0
        %280 = vperm.xlu0 %279, %v226
        %v281 = vpop.permute.xlu0 %280
        %284 = vset.pattern.permute.xlu0 0
        %285 = vperm.xlu0 %284, %v227
        %v286 = vpop.permute.xlu0 %285
        %289 = vset.pattern.permute.xlu0 0
        %290 = vperm.xlu0 %289, %v228
        %v291 = vpop.permute.xlu0 %290
        %294 = vset.pattern.permute.xlu0 0
        %295 = vperm.xlu0 %294, %v229
        %v296 = vpop.permute.xlu0 %295
        %299 = vset.pattern.permute.xlu0 0
        %300 = vperm.xlu0 %299, %v230
        %v301 = vpop.permute.xlu0 %300
        %304 = vset.pattern.permute.xlu0 0
        %305 = vperm.xlu0 %304, %v231
        %v306 = vpop.permute.xlu0 %305
        %309 = vset.pattern.permute.xlu0 0
        %310 = vperm.xlu0 %309, %v232
        %v311 = vpop.permute.xlu0 %310
        %314 = vset.pattern.permute.xlu0 0
        %315 = vperm.xlu0 %314, %v201
        %v316 = vpop.permute.xlu0 %315
        %319 = vset.pattern.permute.xlu0 0
        %320 = vperm.xlu0 %319, %v202
        %v321 = vpop.permute.xlu0 %320
        %324 = vset.pattern.permute.xlu0 0
        %325 = vperm.xlu0 %324, %v203
        %v326 = vpop.permute.xlu0 %325
        %329 = vset.pattern.permute.xlu0 0
        %330 = vperm.xlu0 %329, %v204
        %v331 = vpop.permute.xlu0 %330
        %334 = vset.pattern.permute.xlu0 0
        %335 = vperm.xlu0 %334, %v205
        %v336 = vpop.permute.xlu0 %335
        %339 = vset.pattern.permute.xlu0 0
        %340 = vperm.xlu0 %339, %v206
        %v341 = vpop.permute.xlu0 %340
        %344 = vset.pattern.permute.xlu0 0
        %345 = vperm.xlu0 %344, %v207
        %v346 = vpop.permute.xlu0 %345
        %349 = vset.pattern.permute.xlu0 0
        %350 = vperm.xlu0 %349, %v208
        %v351 = vpop.permute.xlu0 %350
        %354 = vset.pattern.permute.xlu0 0
        %355 = vperm.xlu0 %354, %v209
        %v356 = vpop.permute.xlu0 %355
        %359 = vset.pattern.permute.xlu0 0
        %360 = vperm.xlu0 %359, %v210
        %v361 = vpop.permute.xlu0 %360
        %364 = vset.pattern.permute.xlu0 0
        %365 = vperm.xlu0 %364, %v211
        %v366 = vpop.permute.xlu0 %365
        %369 = vset.pattern.permute.xlu0 0
        %370 = vperm.xlu0 %369, %v212
        %v371 = vpop.permute.xlu0 %370
        %374 = vset.pattern.permute.xlu0 0
        %375 = vperm.xlu0 %374, %v213
        %v376 = vpop.permute.xlu0 %375
        %379 = vset.pattern.permute.xlu0 0
        %380 = vperm.xlu0 %379, %v214
        %v381 = vpop.permute.xlu0 %380
        %384 = vset.pattern.permute.xlu0 0
        %385 = vperm.xlu0 %384, %v215
        %v386 = vpop.permute.xlu0 %385
        %389 = vset.pattern.permute.xlu0 0
        %390 = vperm.xlu0 %389, %v216
        %v391 = vpop.permute.xlu0 %390
        %v394 = vlaneseq
        %v395 = vshrl.u32 %v394, 7
        %v396 = vsub.s32 0, %v395
        %v397 = vrot.slane %v200, %v396
        %v398 = vlaneseq
        %v399 = vshrl.u32 %v398, 7
        %v400 = vsub.s32 4, %v399
        %v401 = vrot.slane %v200, %v400
        %v404 = vlaneseq
        %v405 = vshrl.u32 %v404, 7
        %v406 = vsub.s32 0, %v405
        %v407 = vrot.slane %v397, %v406
        %v408 = vlaneseq
        %v409 = vshrl.u32 %v408, 7
        %v410 = vsub.s32 0, %v409
        %v411 = vrot.slane %v401, %v410
        %v412 = vmul.f32 %v316, %v407
        %v413 = vmul.f32 %v316, %v411
        %v414 = vmul.f32 %v321, %v407
        %v415 = vmul.f32 %v321, %v411
        %v416 = vmul.f32 %v326, %v407
        %v417 = vmul.f32 %v326, %v411
        %v418 = vmul.f32 %v331, %v407
        %v419 = vmul.f32 %v331, %v411
        %v420 = vmul.f32 %v336, %v407
        %v421 = vmul.f32 %v336, %v411
        %v422 = vmul.f32 %v341, %v407
        %v423 = vmul.f32 %v341, %v411
        %v424 = vmul.f32 %v346, %v407
        %v425 = vmul.f32 %v346, %v411
        %v426 = vmul.f32 %v351, %v407
        %v427 = vmul.f32 %v351, %v411
        %v428 = vmul.f32 %v356, %v407
        %v429 = vmul.f32 %v356, %v411
        %v430 = vmul.f32 %v361, %v407
        %v431 = vmul.f32 %v361, %v411
        %v432 = vmul.f32 %v366, %v407
        %v433 = vmul.f32 %v366, %v411
        %v434 = vmul.f32 %v371, %v407
        %v435 = vmul.f32 %v371, %v411
        %v436 = vmul.f32 %v376, %v407
        %v437 = vmul.f32 %v376, %v411
        %v438 = vmul.f32 %v381, %v407
        %v439 = vmul.f32 %v381, %v411
        %v440 = vmul.f32 %v386, %v407
        %v441 = vmul.f32 %v386, %v411
        %v442 = vmul.f32 %v391, %v407
        %v443 = vmul.f32 %v391, %v411
        %v444 = vadd.f32 %v236, %v412
        %v445 = vadd.f32 %v236, %v413
        %v446 = vadd.f32 %v241, %v414
        %v447 = vadd.f32 %v241, %v415
        %v448 = vadd.f32 %v246, %v416
        %v449 = vadd.f32 %v246, %v417
        %v450 = vadd.f32 %v251, %v418
        %v451 = vadd.f32 %v251, %v419
        %v452 = vadd.f32 %v256, %v420
        %v453 = vadd.f32 %v256, %v421
        %v454 = vadd.f32 %v261, %v422
        %v455 = vadd.f32 %v261, %v423
        %v456 = vadd.f32 %v266, %v424
        %v457 = vadd.f32 %v266, %v425
        %v458 = vadd.f32 %v271, %v426
        %v459 = vadd.f32 %v271, %v427
        %v460 = vadd.f32 %v276, %v428
        %v461 = vadd.f32 %v276, %v429
        %v462 = vadd.f32 %v281, %v430
        %v463 = vadd.f32 %v281, %v431
        %v464 = vadd.f32 %v286, %v432
        %v465 = vadd.f32 %v286, %v433
        %v466 = vadd.f32 %v291, %v434
        %v467 = vadd.f32 %v291, %v435
        %v468 = vadd.f32 %v296, %v436
        %v469 = vadd.f32 %v296, %v437
        %v470 = vadd.f32 %v301, %v438
        %v471 = vadd.f32 %v301, %v439
        %v472 = vadd.f32 %v306, %v440
        %v473 = vadd.f32 %v306, %v441
        %v474 = vadd.f32 %v311, %v442
        %v475 = vadd.f32 %v311, %v443
        %476 = vset.pattern.permute.xlu0 1
        %477 = vperm.xlu0 %476, %v201
        %v478 = vpop.permute.xlu0 %477
        %480 = vset.pattern.permute.xlu0 1
        %481 = vperm.xlu0 %480, %v202
        %v482 = vpop.permute.xlu0 %481
        %484 = vset.pattern.permute.xlu0 1
        %485 = vperm.xlu0 %484, %v203
        %v486 = vpop.permute.xlu0 %485
        %488 = vset.pattern.permute.xlu0 1
        %489 = vperm.xlu0 %488, %v204
        %v490 = vpop.permute.xlu0 %489
        %492 = vset.pattern.permute.xlu0 1
        %493 = vperm.xlu0 %492, %v205
        %v494 = vpop.permute.xlu0 %493
        %496 = vset.pattern.permute.xlu0 1
        %497 = vperm.xlu0 %496, %v206
        %v498 = vpop.permute.xlu0 %497
        %500 = vset.pattern.permute.xlu0 1
        %501 = vperm.xlu0 %500, %v207
        %v502 = vpop.permute.xlu0 %501
        %504 = vset.pattern.permute.xlu0 1
        %505 = vperm.xlu0 %504, %v208
        %v506 = vpop.permute.xlu0 %505
        %508 = vset.pattern.permute.xlu0 1
        %509 = vperm.xlu0 %508, %v209
        %v510 = vpop.permute.xlu0 %509
        %512 = vset.pattern.permute.xlu0 1
        %513 = vperm.xlu0 %512, %v210
        %v514 = vpop.permute.xlu0 %513
        %516 = vset.pattern.permute.xlu0 1
        %517 = vperm.xlu0 %516, %v211
        %v518 = vpop.permute.xlu0 %517
        %520 = vset.pattern.permute.xlu0 1
        %521 = vperm.xlu0 %520, %v212
        %v522 = vpop.permute.xlu0 %521
        %524 = vset.pattern.permute.xlu0 1
        %525 = vperm.xlu0 %524, %v213
        %v526 = vpop.permute.xlu0 %525
        %528 = vset.pattern.permute.xlu0 1
        %529 = vperm.xlu0 %528, %v214
        %v530 = vpop.permute.xlu0 %529
        %532 = vset.pattern.permute.xlu0 1
        %533 = vperm.xlu0 %532, %v215
        %v534 = vpop.permute.xlu0 %533
        %536 = vset.pattern.permute.xlu0 1
        %537 = vperm.xlu0 %536, %v216
        %v538 = vpop.permute.xlu0 %537
        %v540 = vlaneseq
        %v541 = vshrl.u32 %v540, 7
        %v542 = vsub.s32 1, %v541
        %v543 = vrot.slane %v200, %v542
        %v544 = vlaneseq
        %v545 = vshrl.u32 %v544, 7
        %v546 = vsub.s32 5, %v545
        %v547 = vrot.slane %v200, %v546
        %v550 = vlaneseq
        %v551 = vshrl.u32 %v550, 7
        %v552 = vsub.s32 1, %v551
        %v553 = vrot.slane %v543, %v552
        %v554 = vlaneseq
        %v555 = vshrl.u32 %v554, 7
        %v556 = vsub.s32 1, %v555
        %v557 = vrot.slane %v547, %v556
        %v558 = vmul.f32 %v478, %v553
        %v559 = vmul.f32 %v478, %v557
        %v560 = vmul.f32 %v482, %v553
        %v561 = vmul.f32 %v482, %v557
        %v562 = vmul.f32 %v486, %v553
        %v563 = vmul.f32 %v486, %v557
        %v564 = vmul.f32 %v490, %v553
        %v565 = vmul.f32 %v490, %v557
        %v566 = vmul.f32 %v494, %v553
        %v567 = vmul.f32 %v494, %v557
        %v568 = vmul.f32 %v498, %v553
        %v569 = vmul.f32 %v498, %v557
        %v570 = vmul.f32 %v502, %v553
        %v571 = vmul.f32 %v502, %v557
        %v572 = vmul.f32 %v506, %v553
        %v573 = vmul.f32 %v506, %v557
        %v574 = vmul.f32 %v510, %v553
        %v575 = vmul.f32 %v510, %v557
        %v576 = vmul.f32 %v514, %v553
        %v577 = vmul.f32 %v514, %v557
        %v578 = vmul.f32 %v518, %v553
        %v579 = vmul.f32 %v518, %v557
        %v580 = vmul.f32 %v522, %v553
        %v581 = vmul.f32 %v522, %v557
        %v582 = vmul.f32 %v526, %v553
        %v583 = vmul.f32 %v526, %v557
        %v584 = vmul.f32 %v530, %v553
        %v585 = vmul.f32 %v530, %v557
        %v586 = vmul.f32 %v534, %v553
        %v587 = vmul.f32 %v534, %v557
        %v588 = vmul.f32 %v538, %v553
        %v589 = vmul.f32 %v538, %v557
        %v590 = vadd.f32 %v444, %v558
        %v591 = vadd.f32 %v445, %v559
        %v592 = vadd.f32 %v446, %v560
        %v593 = vadd.f32 %v447, %v561
        %v594 = vadd.f32 %v448, %v562
        %v595 = vadd.f32 %v449, %v563
        %v596 = vadd.f32 %v450, %v564
        %v597 = vadd.f32 %v451, %v565
        %v598 = vadd.f32 %v452, %v566
        %v599 = vadd.f32 %v453, %v567
        %v600 = vadd.f32 %v454, %v568
        %v601 = vadd.f32 %v455, %v569
        %v602 = vadd.f32 %v456, %v570
        %v603 = vadd.f32 %v457, %v571
        %v604 = vadd.f32 %v458, %v572
        %v605 = vadd.f32 %v459, %v573
        %v606 = vadd.f32 %v460, %v574
        %v607 = vadd.f32 %v461, %v575
        %v608 = vadd.f32 %v462, %v576
        %v609 = vadd.f32 %v463, %v577
        %v610 = vadd.f32 %v464, %v578
        %v611 = vadd.f32 %v465, %v579
        %v612 = vadd.f32 %v466, %v580
        %v613 = vadd.f32 %v467, %v581
        %v614 = vadd.f32 %v468, %v582
        %v615 = vadd.f32 %v469, %v583
        %v616 = vadd.f32 %v470, %v584
        %v617 = vadd.f32 %v471, %v585
        %v618 = vadd.f32 %v472, %v586
        %v619 = vadd.f32 %v473, %v587
        %v620 = vadd.f32 %v474, %v588
        %v621 = vadd.f32 %v475, %v589
        %622 = vset.pattern.permute.xlu0 2
        %623 = vperm.xlu0 %622, %v201
        %v624 = vpop.permute.xlu0 %623
        %626 = vset.pattern.permute.xlu0 2
        %627 = vperm.xlu0 %626, %v202
        %v628 = vpop.permute.xlu0 %627
        %630 = vset.pattern.permute.xlu0 2
        %631 = vperm.xlu0 %630, %v203
        %v632 = vpop.permute.xlu0 %631
        %634 = vset.pattern.permute.xlu0 2
        %635 = vperm.xlu0 %634, %v204
        %v636 = vpop.permute.xlu0 %635
        %638 = vset.pattern.permute.xlu0 2
        %639 = vperm.xlu0 %638, %v205
        %v640 = vpop.permute.xlu0 %639
        %642 = vset.pattern.permute.xlu0 2
        %643 = vperm.xlu0 %642, %v206
        %v644 = vpop.permute.xlu0 %643
        %646 = vset.pattern.permute.xlu0 2
        %647 = vperm.xlu0 %646, %v207
        %v648 = vpop.permute.xlu0 %647
        %650 = vset.pattern.permute.xlu0 2
        %651 = vperm.xlu0 %650, %v208
        %v652 = vpop.permute.xlu0 %651
        %654 = vset.pattern.permute.xlu0 2
        %655 = vperm.xlu0 %654, %v209
        %v656 = vpop.permute.xlu0 %655
        %658 = vset.pattern.permute.xlu0 2
        %659 = vperm.xlu0 %658, %v210
        %v660 = vpop.permute.xlu0 %659
        %662 = vset.pattern.permute.xlu0 2
        %663 = vperm.xlu0 %662, %v211
        %v664 = vpop.permute.xlu0 %663
        %666 = vset.pattern.permute.xlu0 2
        %667 = vperm.xlu0 %666, %v212
        %v668 = vpop.permute.xlu0 %667
        %670 = vset.pattern.permute.xlu0 2
        %671 = vperm.xlu0 %670, %v213
        %v672 = vpop.permute.xlu0 %671
        %674 = vset.pattern.permute.xlu0 2
        %675 = vperm.xlu0 %674, %v214
        %v676 = vpop.permute.xlu0 %675
        %678 = vset.pattern.permute.xlu0 2
        %679 = vperm.xlu0 %678, %v215
        %v680 = vpop.permute.xlu0 %679
        %682 = vset.pattern.permute.xlu0 2
        %683 = vperm.xlu0 %682, %v216
        %v684 = vpop.permute.xlu0 %683
        %v686 = vlaneseq
        %v687 = vshrl.u32 %v686, 7
        %v688 = vsub.s32 2, %v687
        %v689 = vrot.slane %v200, %v688
        %v690 = vlaneseq
        %v691 = vshrl.u32 %v690, 7
        %v692 = vsub.s32 6, %v691
        %v693 = vrot.slane %v200, %v692
        %v696 = vlaneseq
        %v697 = vshrl.u32 %v696, 7
        %v698 = vsub.s32 2, %v697
        %v699 = vrot.slane %v689, %v698
        %v700 = vlaneseq
        %v701 = vshrl.u32 %v700, 7
        %v702 = vsub.s32 2, %v701
        %v703 = vrot.slane %v693, %v702
        %v704 = vmul.f32 %v624, %v699
        %v705 = vmul.f32 %v624, %v703
        %v706 = vmul.f32 %v628, %v699
        %v707 = vmul.f32 %v628, %v703
        %v708 = vmul.f32 %v632, %v699
        %v709 = vmul.f32 %v632, %v703
        %v710 = vmul.f32 %v636, %v699
        %v711 = vmul.f32 %v636, %v703
        %v712 = vmul.f32 %v640, %v699
        %v713 = vmul.f32 %v640, %v703
        %v714 = vmul.f32 %v644, %v699
        %v715 = vmul.f32 %v644, %v703
        %v716 = vmul.f32 %v648, %v699
        %v717 = vmul.f32 %v648, %v703
        %v718 = vmul.f32 %v652, %v699
        %v719 = vmul.f32 %v652, %v703
        %v720 = vmul.f32 %v656, %v699
        %v721 = vmul.f32 %v656, %v703
        %v722 = vmul.f32 %v660, %v699
        %v723 = vmul.f32 %v660, %v703
        %v724 = vmul.f32 %v664, %v699
        %v725 = vmul.f32 %v664, %v703
        %v726 = vmul.f32 %v668, %v699
        %v727 = vmul.f32 %v668, %v703
        %v728 = vmul.f32 %v672, %v699
        %v729 = vmul.f32 %v672, %v703
        %v730 = vmul.f32 %v676, %v699
        %v731 = vmul.f32 %v676, %v703
        %v732 = vmul.f32 %v680, %v699
        %v733 = vmul.f32 %v680, %v703
        %v734 = vmul.f32 %v684, %v699
        %v735 = vmul.f32 %v684, %v703
        %v736 = vadd.f32 %v590, %v704
        %v737 = vadd.f32 %v591, %v705
        %v738 = vadd.f32 %v592, %v706
        %v739 = vadd.f32 %v593, %v707
        %v740 = vadd.f32 %v594, %v708
        %v741 = vadd.f32 %v595, %v709
        %v742 = vadd.f32 %v596, %v710
        %v743 = vadd.f32 %v597, %v711
        %v744 = vadd.f32 %v598, %v712
        %v745 = vadd.f32 %v599, %v713
        %v746 = vadd.f32 %v600, %v714
        %v747 = vadd.f32 %v601, %v715
        %v748 = vadd.f32 %v602, %v716
        %v749 = vadd.f32 %v603, %v717
        %v750 = vadd.f32 %v604, %v718
        %v751 = vadd.f32 %v605, %v719
        %v752 = vadd.f32 %v606, %v720
        %v753 = vadd.f32 %v607, %v721
        %v754 = vadd.f32 %v608, %v722
        %v755 = vadd.f32 %v609, %v723
        %v756 = vadd.f32 %v610, %v724
        %v757 = vadd.f32 %v611, %v725
        %v758 = vadd.f32 %v612, %v726
        %v759 = vadd.f32 %v613, %v727
        %v760 = vadd.f32 %v614, %v728
        %v761 = vadd.f32 %v615, %v729
        %v762 = vadd.f32 %v616, %v730
        %v763 = vadd.f32 %v617, %v731
        %v764 = vadd.f32 %v618, %v732
        %v765 = vadd.f32 %v619, %v733
        %v766 = vadd.f32 %v620, %v734
        %v767 = vadd.f32 %v621, %v735
        %768 = vst [vmem:[%s188] sm:$0xff] %v736
        %769 = vst [vmem:[%s188 + $0x8] sm:$0xff] %v737
        %770 = vst [vmem:[%s188 + $0x10] sm:$0xff] %v738
        %771 = vst [vmem:[%s188 + $0x18] sm:$0xff] %v739
        %772 = vst [vmem:[%s188 + $0x20] sm:$0xff] %v740
        %773 = vst [vmem:[%s188 + $0x28] sm:$0xff] %v741
        %774 = vst [vmem:[%s188 + $0x30] sm:$0xff] %v742
        %775 = vst [vmem:[%s188 + $0x38] sm:$0xff] %v743
        %776 = vst [vmem:[%s188 + $0x40] sm:$0xff] %v744
        %777 = vst [vmem:[%s188 + $0x48] sm:$0xff] %v745
        %778 = vst [vmem:[%s188 + $0x50] sm:$0xff] %v746
        %779 = vst [vmem:[%s188 + $0x58] sm:$0xff] %v747
        %780 = vst [vmem:[%s188 + $0x60] sm:$0xff] %v748
        %781 = vst [vmem:[%s188 + $0x68] sm:$0xff] %v749
        %782 = vst [vmem:[%s188 + $0x70] sm:$0xff] %v750
        %783 = vst [vmem:[%s188 + $0x78] sm:$0xff] %v751
        %784 = vst [vmem:[%s188 + $0x80] sm:$0xff] %v752
        %785 = vst [vmem:[%s188 + $0x88] sm:$0xff] %v753
        %786 = vst [vmem:[%s188 + $0x90] sm:$0xff] %v754
        %787 = vst [vmem:[%s188 + $0x98] sm:$0xff] %v755
        %788 = vst [vmem:[%s188 + $0xa0] sm:$0xff] %v756
        %789 = vst [vmem:[%s188 + $0xa8] sm:$0xff] %v757
        %790 = vst [vmem:[%s188 + $0xb0] sm:$0xff] %v758
        %791 = vst [vmem:[%s188 + $0xb8] sm:$0xff] %v759
        %792 = vst [vmem:[%s188 + $0xc0] sm:$0xff] %v760
        %793 = vst [vmem:[%s188 + $0xc8] sm:$0xff] %v761
        %794 = vst [vmem:[%s188 + $0xd0] sm:$0xff] %v762
        %795 = vst [vmem:[%s188 + $0xd8] sm:$0xff] %v763
        %796 = vst [vmem:[%s188 + $0xe0] sm:$0xff] %v764
        %797 = vst [vmem:[%s188 + $0xe8] sm:$0xff] %v765
        %798 = vst [vmem:[%s188 + $0xf0] sm:$0xff] %v766
        %799 = vst [vmem:[%s188 + $0xf8] sm:$0xff] %v767
        %s800 = sand.u32 %s109, 1
        %s801 = scalar_lea.sflag [#allocation3], %s800
        %s802 = sand.u32 %s109, 1
        %s803 = smul.addr %s802, 256
        %s804 = scalar_lea.vmem [#allocation2], %s803
        // Predicated region
        $region33: #{tpu_custom_call.1} parent=31 // pred_check
          %p805 = pneg %p119
        $region34: #{tpu_custom_call.1} parent=31 // pred_check_branch
          %807 = sbr.rel (%p805) target = $region36
        $region35: #{tpu_custom_call.1} parent=31 // pred_region
          %s808 = smul.u32 2, %s22
          %s810 = ssub.s32 4096, 4096
          %811 = vsyncadd %s801, %s810
          %s812 = smul.addr %s21, 32
          %s813 = sadd.s32 %s808, %s812
          %s814 = smul.addr %s813, 128
          %s815 = scalar_lea.hbm %s3, %s814
          %s816 = sshll.u32 %s804, 4
          %s817 = int_to_ptr.vmem [resolvable:$true] %s816
          %822 = dma.vmem_to_hbm [thread:$0]  %s817, 4096, %s815, %s801, 256, 256, 16
        $region36: #{tpu_custom_call.1} parent=31 // pred_fallthru
          _
      $region32: #{tpu_custom_call.1} parent=5 // pred_fallthru
        _
      %p823 = scmp.le.s32.totalorder 2, %s12
      // Predicated region
      $region37: #{tpu_custom_call.1} parent=5 // pred_check
        %p824 = pneg %p823
      $region38: #{tpu_custom_call.1} parent=5 // pred_check_branch
        %826 = sbr.rel (%p824) target = $region40
      $region39: #{tpu_custom_call.1} parent=5 // pred_region
        %s827 = ssub.s32 %s12, 2
        // Predicated region
        $region41: #{tpu_custom_call.1} parent=39 // pred_check
          %p828 = pneg %p125
        $region42: #{tpu_custom_call.1} parent=39 // pred_check_branch
          %830 = sbr.rel (%p828) target = $region44
        $region43: #{tpu_custom_call.1} parent=39 // pred_region
          %s831 = sand.u32 %s110, 1
          %s832 = scalar_lea.sflag [#allocation3], %s831
          %s833 = sand.u32 %s110, 1
          %s834 = smul.addr %s833, 256
          %s835 = scalar_lea.vmem [#allocation2], %s834
          %836 = dma.done %s832, 4096
        $region44: #{tpu_custom_call.1} parent=39 // pred_fallthru
          _
      $region40: #{tpu_custom_call.1} parent=5 // pred_fallthru
        _
    $region6: #{tpu_custom_call.1} parent=1 // loop_footer
      %s16 = sadd.s32 1, %s12
    $region7: #{tpu_custom_call.1} parent=1 // loop_footer_branch
      %11 = sbr.rel target = $region3
    $region8: #{tpu_custom_call.1} parent=1 // loop_exit
      _
    %837 = vsyncpa [#allocation3], 1
    %s838 = scalar_lea.sflag [#allocation3], 1
    %839 = vsyncpa %s838, 1

</llo_original>
